<compile_context>
chip_gen: v7x
topology: tpu7x:2x2x1
jax: 0.10.0
libtpu: 0.0.40
codegen_flags: <defaults>
</compile_context>

<pallas_src>
import jax
import jax.numpy as jnp
from jax.experimental import pallas as pl
from jax.experimental.pallas import tpu as pltpu


def _round_up(x, m):
    return ((x + m - 1) // m) * m


def _pick_ti(inter, ti_req):
    """Largest lane-aligned (mult of 128) divisor of `inter` that is <= ti_req,
    falling back to `inter` itself for tiny intermediate sizes."""
    ti = min(ti_req, inter)
    if inter % ti == 0 and (ti % 128 == 0 or ti == inter):
        return ti
    best = None
    c = 128
    while c <= ti:
        if inter % c == 0:
            best = c
        c += 128
    return best if best is not None else inter


def pack_internlm2_mlp_weights(w1, w3, w2, *, ti=512):
    """Pre-tile InternLM2 MLP weights for the Pallas kernel.  Call ONCE at
    weight-load time (not per forward).

    w1, w3: (intermediate, hidden)  -- nn.Linear weights (out, in)
    w2:     (hidden, intermediate)  -- nn.Linear weight  (out, in)

    Returns:
      w13_packed: (nk, hidden, 2*ti)   block k = [w1_t[:, k-block] | w3_t[:, k-block]]
      w2_packed:  (nk, ti, hidden)     block k = w2_t[k-block, :]
    Each k-block is contiguous in HBM -> single linear DMA stream per grid step.
    """
    inter, hidden = w1.shape
    assert w3.shape == (inter, hidden)
    assert w2.shape == (hidden, inter)
    ti = _pick_ti(inter, ti)
    nk = inter // ti
    # (inter, hidden) -> (nk, ti, hidden) -> (nk, hidden, ti)
    w1_b = jnp.transpose(w1.reshape(nk, ti, hidden), (0, 2, 1))
    w3_b = jnp.transpose(w3.reshape(nk, ti, hidden), (0, 2, 1))
    w13_packed = jnp.concatenate([w1_b, w3_b], axis=-1)      # (nk, H, 2*ti)
    # (hidden, inter) -> (inter, hidden) -> (nk, ti, hidden)
    w2_packed = jnp.transpose(w2, (1, 0)).reshape(nk, ti, hidden)
    return w13_packed, w2_packed


def _mlp_kernel(x_ref, w13_ref, w2_ref, o_ref, acc_ref):
    # x_ref:   (tm, H)        token tile (constant over k and split)
    # w13_ref: (H, 2*ti)      fused [gate | up] weight block (leading dim squeezed)
    # w2_ref:  (ti, H)        down-projection block
    # o_ref:   (tm, H)        per-split output tile (written at last k)
    # acc_ref: (tm, H) f32    VMEM accumulator, persists across k
    k = pl.program_id(2)
    ti = w2_ref.shape[0]

    @pl.when(k == 0)
    def _():
        acc_ref[...] = jnp.zeros_like(acc_ref)

    x = x_ref[...]
    # One fused MXU matmul for gate and up projections.
    gu = jnp.dot(x, w13_ref[...], preferred_element_type=jnp.float32)
    gate = gu[:, :ti]
    up = gu[:, ti:]
    # SiLU(gate) * up in f32 (VPU/EUP).
    h = (gate * jax.nn.sigmoid(gate)) * up
    # Partial down projection, accumulated in f32.
    acc_ref[...] += jnp.dot(h.astype(w2_ref.dtype), w2_ref[...],
                            preferred_element_type=jnp.float32)

    @pl.when(k == pl.num_programs(2) - 1)
    def _():
        o_ref[...] = acc_ref[...].astype(o_ref.dtype)


def internlm2_mlp(x, w13_packed, w2_packed, *, tm=512, i_splits=None,
                  vmem_limit_cap=100 * 1024 * 1024):
    """InternLM2 SwiGLU MLP forward.

    x:          (batch, seq, hidden)
    w13_packed: (nk, hidden, 2*ti)   from pack_internlm2_mlp_weights
    w2_packed:  (nk, ti, hidden)

    Tuning: v7x -> tm=512 (fits 64 MiB/TC VMEM); v6e -> tm=512-1024;
            v5e -> tm=256 with ti=1024 chosen at pack time.
    """
    batch, seq, hidden = x.shape
    nk, ti, hidden2 = w2_packed.shape
    assert hidden2 == hidden
    assert w13_packed.shape == (nk, hidden, 2 * ti)
    inter = nk * ti

    M = batch * seq
    x2d = x.reshape(M, hidden)

    # Token tile: MXU-aligned caller default, shrunk (but kept >= 16-ish and a
    # multiple of 8) for tiny/decode inputs.
    tm_eff = _round_up(min(tm, _round_up(M, 16)), 8)
    M_pad = _round_up(M, tm_eff)
    if M_pad != M:
        x2d = jnp.pad(x2d, ((0, M_pad - M), (0, 0)))
    n_m_tiles = M_pad // tm_eff

    # Split the intermediate (reduction) axis across a leading parallel grid
    # axis when there is only one token tile, so both v7x TensorCores stream
    # weights in the decode regime.  Partial outputs are summed below.
    if i_splits is None:
        i_splits = 2 if (n_m_tiles == 1 and nk >= 2 and nk % 2 == 0) else 1
    if nk % i_splits != 0:
        i_splits = 1
    nk_per_split = nk // i_splits

    grid = (i_splits, n_m_tiles, nk_per_split)

    x_isz = jnp.dtype(x.dtype).itemsize
    w_isz = jnp.dtype(w13_packed.dtype).itemsize

    # VMEM footprint: double-buffered x / w13 / w2 / out tiles + f32 accumulator.
    vmem_need = (2 * tm_eff * hidden * x_isz          # x
                 + 2 * hidden * (2 * ti) * w_isz      # w13 block
                 + 2 * ti * hidden * w_isz            # w2 block
                 + 2 * tm_eff * hidden * x_isz        # out
                 + tm_eff * hidden * 4)               # acc
    vmem_limit = int(min(vmem_limit_cap, max(32 * 1024 * 1024,
                                             vmem_need + (4 << 20))))

    # Advisory cost estimate (weights are re-streamed once per token tile).
    cost = pl.CostEstimate(
        flops=6 * M_pad * hidden * inter,
        transcendentals=M_pad * inter,
        bytes_accessed=(M_pad * hidden * x_isz
                        + n_m_tiles * (w13_packed.size + w2_packed.size) * w_isz
                        + i_splits * M_pad * hidden * x_isz),
    )

    out = pl.pallas_call(
        _mlp_kernel,
        out_shape=jax.ShapeDtypeStruct((i_splits, M_pad, hidden), x.dtype),
        grid_spec=pltpu.PrefetchScalarGridSpec(
            num_scalar_prefetch=0,
            grid=grid,
            in_specs=[
                # token tile: constant over split and k -> DMA'd once per i
                pl.BlockSpec((tm_eff, hidden), lambda s, i, k: (i, 0)),
                # contiguous fused [gate|up] weight block
                pl.BlockSpec((None, hidden, 2 * ti),
                             lambda s, i, k: (s * nk_per_split + k, 0, 0)),
                # contiguous down-projection block
                pl.BlockSpec((None, ti, hidden),
                             lambda s, i, k: (s * nk_per_split + k, 0, 0)),
            ],
            out_specs=pl.BlockSpec((None, tm_eff, hidden),
                                   lambda s, i, k: (s, i, 0)),
            scratch_shapes=[pltpu.VMEM((tm_eff, hidden), jnp.float32)],
        ),
        compiler_params=pltpu.CompilerParams(
            dimension_semantics=("parallel", "parallel", "arbitrary"),
            vmem_limit_bytes=vmem_limit),
        cost_estimate=cost,
    )(x2d, w13_packed, w2_packed)

    out2d = jnp.sum(out, axis=0) if i_splits > 1 else out[0]
    if M_pad != M:
        out2d = out2d[:M]
    return out2d.reshape(batch, seq, hidden)


def _reference_mlp(x, w1, w3, w2):
    # nn.Linear weights are (out_features, in_features).
    g = x @ w1.T
    u = x @ w3.T
    return (jax.nn.silu(g) * u) @ w2.T


def _run_case(key, batch, seq, hidden, inter, *, tm=512, ti=512):
    kx, k1, k2, k3 = jax.random.split(key, 4)
    x = jax.random.normal(kx, (batch, seq, hidden), dtype=jnp.float32)
    w1 = jax.random.normal(k1, (inter, hidden), dtype=jnp.float32) * 0.02
    w3 = jax.random.normal(k3, (inter, hidden), dtype=jnp.float32) * 0.02
    w2 = jax.random.normal(k2, (hidden, inter), dtype=jnp.float32) * 0.02

    # One-time weight prep (hoisted out of the forward path).
    w13_p, w2_p = pack_internlm2_mlp_weights(w1, w3, w2, ti=ti)

    out = internlm2_mlp(x, w13_p, w2_p, tm=tm)
    out = jax.block_until_ready(out)

    ref = _reference_mlp(x, w1, w3, w2)
    assert out.shape == (batch, seq, hidden)
    assert jnp.allclose(out, ref, atol=2e-5, rtol=1e-5), "mismatch vs reference"


if __name__ == "__main__":
    key = jax.random.PRNGKey(0)
    k_a, k_b, k_c = jax.random.split(key, 3)

    # Small config consistent with the module (SwiGLU): hidden=32, inter=128.
    _run_case(k_a, batch=2, seq=8, hidden=32, inter=128)

    # Decode-like: token padding (M=10 -> 16) + I-split across the leading
    # parallel axis (nk=2, i_splits=2, partial-output sum).
    _run_case(k_b, batch=2, seq=5, hidden=32, inter=256, ti=128)

    # Multiple token tiles + multi-step reduction without the I-split.
    _run_case(k_c, batch=1, seq=48, hidden=32, inter=256, tm=16, ti=128)

    print("KERNEL_OK")
</pallas_src>

<mosaic_0001>
module attributes {stable_mosaic.version = 11 : i64} {
  func.func @_mlp_kernel(%arg0: i32, %arg1: i32, %arg2: i32, %arg3: memref<16x32xf32, #tpu.memory_space<vmem>>, %arg4: memref<1x32x256xf32, #tpu.memory_space<vmem>>, %arg5: memref<1x128x32xf32, #tpu.memory_space<vmem>>, %arg6: memref<1x16x32xf32, #tpu.memory_space<vmem>>, %arg7: memref<16x32xf32, #tpu.memory_space<vmem>>) attributes {dimension_semantics = [#tpu.dimension_semantics<parallel>, #tpu.dimension_semantics<parallel>, #tpu.dimension_semantics<arbitrary>], iteration_bounds = array<i64: 1, 1, 1>, scalar_prefetch = 0 : i64, scratch_operands = 1 : i64, tpu.core_type = #tpu.core_type<tc>, window_params = [{transform_indices = @transform_0, window_bounds = array<i64: 16, 32>}, {transform_indices = @transform_1, window_bounds = array<i64: 1, 32, 256>}, {transform_indices = @transform_2, window_bounds = array<i64: 1, 128, 32>}, {transform_indices = @transform_3, window_bounds = array<i64: 1, 16, 32>}]} {
    %c0_i32 = arith.constant 0 : i32
    %0 = arith.cmpi eq, %arg2, %c0_i32 : i32
    %1 = arith.extui %0 : i1 to i32
    %c0_i32_0 = arith.constant 0 : i32
    %2 = arith.cmpi ne, %1, %c0_i32_0 : i32
    scf.if %2 {
      %cst_16 = arith.constant 0.000000e+00 : f32
      %25 = vector.broadcast %cst_16 : f32 to vector<16x32xf32>
      %c0_17 = arith.constant 0 : index
      %c0_18 = arith.constant 0 : index
      %26 = vector.load %arg7[%c0_17, %c0_18] : memref<16x32xf32, #tpu.memory_space<vmem>>, vector<16x32xf32>
      tpu.vector_store %arg7[%c0_17, %c0_18], %25 {strides = array<i32>} : memref<16x32xf32, #tpu.memory_space<vmem>>, vector<16x32xf32>,
    } else {
    }
    %c0 = arith.constant 0 : index
    %c0_1 = arith.constant 0 : index
    %3 = vector.load %arg3[%c0, %c0_1] : memref<16x32xf32, #tpu.memory_space<vmem>>, vector<16x32xf32>
    %c0_2 = arith.constant 0 : index
    %c0_3 = arith.constant 0 : index
    %c0_4 = arith.constant 0 : index
    %4 = vector.load %arg4[%c0_2, %c0_3, %c0_4] : memref<1x32x256xf32, #tpu.memory_space<vmem>>, vector<1x32x256xf32>
    %5 = vector.shape_cast %4 : vector<1x32x256xf32> to vector<32x256xf32>
    %cst = arith.constant dense<0.000000e+00> : vector<16x256xf32>
    %6 = tpu.matmul %3, %5, %cst {dimension_numbers = #tpu.dot_dimension_numbers<[1], [0], [0], [1], [0, 0, 1, 1], [], []>} : vector<16x32xf32>, vector<32x256xf32>, vector<16x256xf32> -> vector<16x256xf32>
    %7 = vector.extract_strided_slice %6 {offsets = [0, 0], sizes = [16, 128], strides = [1, 1]} : vector<16x256xf32> to vector<16x128xf32>
    %8 = vector.extract_strided_slice %6 {offsets = [0, 128], sizes = [16, 128], strides = [1, 1]} : vector<16x256xf32> to vector<16x128xf32>
    %9 = arith.negf %7 : vector<16x128xf32>
    %10 = math.exp %9 : vector<16x128xf32>
    %cst_5 = arith.constant 1.000000e+00 : f32
    %11 = vector.broadcast %cst_5 : f32 to vector<16x128xf32>
    %12 = arith.addf %11, %10 : vector<16x128xf32>
    %13 = arith.divf %11, %12 : vector<16x128xf32>
    %14 = arith.mulf %7, %13 : vector<16x128xf32>
    %15 = arith.mulf %14, %8 : vector<16x128xf32>
    %c0_6 = arith.constant 0 : index
    %c0_7 = arith.constant 0 : index
    %16 = vector.load %arg7[%c0_6, %c0_7] : memref<16x32xf32, #tpu.memory_space<vmem>>, vector<16x32xf32>
    %c0_8 = arith.constant 0 : index
    %c0_9 = arith.constant 0 : index
    %c0_10 = arith.constant 0 : index
    %17 = vector.load %arg5[%c0_8, %c0_9, %c0_10] : memref<1x128x32xf32, #tpu.memory_space<vmem>>, vector<1x128x32xf32>
    %18 = vector.shape_cast %17 : vector<1x128x32xf32> to vector<128x32xf32>
    %cst_11 = arith.constant dense<0.000000e+00> : vector<16x32xf32>
    %19 = tpu.matmul %15, %18, %cst_11 {dimension_numbers = #tpu.dot_dimension_numbers<[1], [0], [0], [1], [0, 0, 1, 1], [], []>} : vector<16x128xf32>, vector<128x32xf32>, vector<16x32xf32> -> vector<16x32xf32>
    %20 = arith.addf %16, %19 : vector<16x32xf32>
    %c0_12 = arith.constant 0 : index
    %c0_13 = arith.constant 0 : index
    %21 = vector.load %arg7[%c0_12, %c0_13] : memref<16x32xf32, #tpu.memory_space<vmem>>, vector<16x32xf32>
    tpu.vector_store %arg7[%c0_12, %c0_13], %20 {strides = array<i32>} : memref<16x32xf32, #tpu.memory_space<vmem>>, vector<16x32xf32>,
    %c0_i32_14 = arith.constant 0 : i32
    %22 = arith.cmpi eq, %arg2, %c0_i32_14 : i32
    %23 = arith.extui %22 : i1 to i32
    %c0_i32_15 = arith.constant 0 : i32
    %24 = arith.cmpi ne, %23, %c0_i32_15 : i32
    scf.if %24 {
      %c0_16 = arith.constant 0 : index
      %c0_17 = arith.constant 0 : index
      %25 = vector.load %arg7[%c0_16, %c0_17] : memref<16x32xf32, #tpu.memory_space<vmem>>, vector<16x32xf32>
      %c0_18 = arith.constant 0 : index
      %c0_19 = arith.constant 0 : index
      %c0_20 = arith.constant 0 : index
      %26 = vector.load %arg6[%c0_18, %c0_19, %c0_20] : memref<1x16x32xf32, #tpu.memory_space<vmem>>, vector<1x16x32xf32>
      %27 = vector.shape_cast %26 : vector<1x16x32xf32> to vector<16x32xf32>
      %28 = vector.shape_cast %25 : vector<16x32xf32> to vector<1x16x32xf32>
      tpu.vector_store %arg6[%c0_18, %c0_19, %c0_20], %28 {strides = array<i32>} : memref<1x16x32xf32, #tpu.memory_space<vmem>>, vector<1x16x32xf32>,
    } else {
    }
    return
  }
  func.func @transform_0(%arg0: i32, %arg1: i32, %arg2: i32) -> (i32, i32) {
    %c0_i32 = arith.constant 0 : i32
    %c0_i32_0 = arith.constant 0 : i32
    return %arg1, %c0_i32 : i32, i32
  }
  func.func @transform_1(%arg0: i32, %arg1: i32, %arg2: i32) -> (i32, i32, i32) {
    %c1_i32 = arith.constant 1 : i32
    %0 = arith.muli %arg0, %c1_i32 : i32
    %1 = arith.addi %0, %arg2 : i32
    %c0_i32 = arith.constant 0 : i32
    %c0_i32_0 = arith.constant 0 : i32
    %c0_i32_1 = arith.constant 0 : i32
    return %1, %c0_i32, %c0_i32_0 : i32, i32, i32
  }
  func.func @transform_2(%arg0: i32, %arg1: i32, %arg2: i32) -> (i32, i32, i32) {
    %c1_i32 = arith.constant 1 : i32
    %0 = arith.muli %arg0, %c1_i32 : i32
    %1 = arith.addi %0, %arg2 : i32
    %c0_i32 = arith.constant 0 : i32
    %c0_i32_0 = arith.constant 0 : i32
    %c0_i32_1 = arith.constant 0 : i32
    return %1, %c0_i32, %c0_i32_0 : i32, i32, i32
  }
  func.func @transform_3(%arg0: i32, %arg1: i32, %arg2: i32) -> (i32, i32, i32) {
    %c0_i32 = arith.constant 0 : i32
    %c0_i32_0 = arith.constant 0 : i32
    return %arg0, %arg1, %c0_i32 : i32, i32, i32
  }
}

</mosaic_0001>

<llo_original>
// kernel: tpu_custom_call.1
$region0: #{tpu_custom_call.1}
  #allocation0 [shape = 'u32[]', space=smem, size = 0x4, offset = 0x4, fixed_abs, tag = 'smem constant byte address 0x4 - core index']
  #allocation1 [shape = 'u32[144,128]{1,0:T(1,128)}', space=vmem, size = 0x12000, scoped, tag = 'internal scratch']
  #allocation2 [shape = 'f32[16,32]{1,0:T(8,128)}', space=vmem, size = 0x2000, scoped, tag = 'scratch operand']
  %s0 = inlined_call_operand.vmem [shape: f32[16,32], index: 0, kind: input, shape index: {}]
  %s1 = inlined_call_operand.vmem [shape: f32[1,32,256], index: 1, kind: input, shape index: {}]
  %s2 = inlined_call_operand.vmem [shape: f32[1,128,32], index: 2, kind: input, shape index: {}]
  %s3 = inlined_call_operand.hbm [shape: f32[1,16,32], index: 3, kind: output, shape index: {}]
  %s4 = sld [smem:[#allocation0]]
  $region30: #{tpu_custom_call.1} parent=0
    _
  %s6 = ssub.s32 1, %s4
  %s7 = scalar_select 0, %s6, %s4
  $region1: #{tpu_custom_call.1} parent=0
    #allocation3 [shape = 'u8[8192]{0}', space=vmem, size = 0x2000, scoped, tag = 'output window, operand 0, single buffered']
    #allocation4 [shape = 's32[1]{0}', space=sflag, size = 0x4, scoped, tag = 'scoped memory for tpu_custom_call.1']
    %8 = vsyncpa [#allocation4], 0
    // Predicated region
    $region2: #{tpu_custom_call.1} parent=1 // pred_check
      _
    $region3: #{tpu_custom_call.1} parent=1 // pred_check_branch
      %10 = sbr.rel (0) target = $region5
    $region4: #{tpu_custom_call.1} parent=1 // pred_region
      _
    $region5: #{tpu_custom_call.1} parent=1 // pred_fallthru
      _
    // Predicated region
    $region6: #{tpu_custom_call.1} parent=1 // pred_check
      _
    $region7: #{tpu_custom_call.1} parent=1 // pred_check_branch
      %12 = sbr.rel (0) target = $region9
    $region8: #{tpu_custom_call.1} parent=1 // pred_region
      %s13 = sadd.s32 0, 0
      %p14 = scmp.lt.s32.totalorder %s13, 0
      %s15 = scalar_select %p14, %s13, 0
      %s16 = smul.addr %s15, 8
      %s17 = smul.addr %s16, 8
      %s18 = scalar_lea.vmem %s1, %s17
      %s19 = sadd.s32 0, 0
    $region9: #{tpu_custom_call.1} parent=1 // pred_fallthru
      _
    // Predicated region
    $region10: #{tpu_custom_call.1} parent=1 // pred_check
      _
    $region11: #{tpu_custom_call.1} parent=1 // pred_check_branch
      %21 = sbr.rel (0) target = $region13
    $region12: #{tpu_custom_call.1} parent=1 // pred_region
      %s22 = sadd.s32 0, 0
      %p23 = scmp.lt.s32.totalorder %s22, 0
      %s24 = scalar_select %p23, %s22, 0
      %s25 = smul.addr %s24, 16
      %s26 = smul.addr %s25, 8
      %s27 = scalar_lea.vmem %s2, %s26
      %s28 = sadd.s32 0, 0
    $region13: #{tpu_custom_call.1} parent=1 // pred_fallthru
      _
    %s29 = sadd.s32 0, 0
    %p30 = scmp.lt.s32.totalorder %s29, 0
    %s31 = scalar_select %p30, %s29, 0
    %s32 = smul.addr %s31, 8
    %s33 = smul.addr %s32, 8
    %s34 = scalar_lea.vmem %s1, %s33
    %s35 = sadd.s32 0, 0
    %p36 = scmp.lt.s32.totalorder %s35, 0
    %s37 = scalar_select %p36, %s35, 0
    %s38 = smul.addr %s37, 16
    %s39 = smul.addr %s38, 8
    %s40 = scalar_lea.vmem %s2, %s39
    %s41 = sadd.s32 0, 0
    %p42 = scmp.lt.s32.totalorder %s41, 0
    %s43 = scalar_select %p42, %s41, 0
    %s44 = smul.addr %s43, 8
    %s45 = smul.addr %s44, 8
    %s46 = scalar_lea.vmem %s1, %s45
    %s47 = sadd.s32 0, 0
    %s48 = sadd.s32 0, 0
    %p49 = scmp.lt.s32.totalorder %s48, 0
    %s50 = scalar_select %p49, %s48, 0
    %s51 = smul.addr %s50, 16
    %s52 = smul.addr %s51, 8
    %s53 = scalar_lea.vmem %s2, %s52
    %s54 = sadd.s32 0, 0
    %p55 = scmp.eq.s32.totalorder 0, 0
    // Predicated region
    $region14: #{tpu_custom_call.1} parent=1 // pred_check
      %p56 = pneg %p55
    $region15: #{tpu_custom_call.1} parent=1 // pred_check_branch
      %58 = sbr.rel (%p56) target = $region17
    $region16: #{tpu_custom_call.1} parent=1 // pred_region
      %vm59 = vcmask 261120
      %60 = vst.msk [vmem:[#allocation2] sm:$0xff] %vm59, 0.0
      %61 = vst.msk [vmem:[#allocation2 + $0x8] sm:$0xff] %vm59, 0.0
    $region17: #{tpu_custom_call.1} parent=1 // pred_fallthru
      _
    %v62 = vld [vmem:[%s0] sm:$0xff]
    %v63 = vld [vmem:[%s0 + $0x8] sm:$0xff]
    %v64 = vld [vmem:[%s46] sm:$0xff]
    %v65 = vld [vmem:[%s46 + $0x8] sm:$0xff]
    %v66 = vld [vmem:[%s46 + $0x10] sm:$0xff]
    %v67 = vld [vmem:[%s46 + $0x18] sm:$0xff]
    %v68 = vld [vmem:[%s46 + $0x20] sm:$0xff]
    %v69 = vld [vmem:[%s46 + $0x28] sm:$0xff]
    %v70 = vld [vmem:[%s46 + $0x30] sm:$0xff]
    %v71 = vld [vmem:[%s46 + $0x38] sm:$0xff]
    %vm72 = vcmask 261120
    %v74 = vsel %vm72, %v62, 0
    %v77 = vsel %vm72, %v63, 0
    %79 = vmatprep.subr.mxu0 %v65
    %80 = vmatpush1.msra.mxu0 %v64
    %81 = vmatprep.subr.mxu0 %v67
    %82 = vmatpush1.msra.mxu0 %v66
    %83 = vmatprep.subr.mxu0 %v69
    %84 = vmatpush1.msra.mxu0 %v68
    %85 = vmatprep.subr.mxu0 %v71
    %86 = vmatpush1.msra.mxu0 %v70
    %87 = vmatprep.subr.mxu0 0.0
    %88 = vmatpush1.msra.mxu0 0.0
    %89 = vmatprep.subr.mxu0 0.0
    %90 = vmatpush1.msra.mxu0 0.0
    %91 = vmatprep.subr.mxu0 0.0
    %92 = vmatpush1.msra.mxu0 0.0
    %93 = vmatprep.subr.mxu0 0.0
    %94 = vmatpush1.msra.mxu0 0.0
    %95 = vmatprep.subr.mxu0 0.0
    %96 = vmatpush1.msra.mxu0 0.0
    %97 = vmatprep.subr.mxu0 0.0
    %98 = vmatpush1.msra.mxu0 0.0
    %99 = vmatprep.subr.mxu0 0.0
    %100 = vmatpush1.msra.mxu0 0.0
    %101 = vmatprep.subr.mxu0 0.0
    %102 = vmatpush1.msra.mxu0 0.0
    %103 = vmatprep.subr.mxu0 0.0
    %104 = vmatpush1.msra.mxu0 0.0
    %105 = vmatprep.subr.mxu0 0.0
    %106 = vmatpush1.msra.mxu0 0.0
    %107 = vmatprep.subr.mxu0 0.0
    %108 = vmatpush1.msra.mxu0 0.0
    %109 = vmatprep.subr.mxu0 0.0
    %110 = vmatpush1.msra.mxu0 0.0
    %111 = vmatprep.subr.mxu0 0.0
    %112 = vmatpush1.msra.mxu0 0.0
    %113 = vmatprep.subr.mxu0 0.0
    %114 = vmatpush1.msra.mxu0 0.0
    %115 = vmatprep.subr.mxu0 0.0
    %116 = vmatpush1.msra.mxu0 0.0
    %117 = vmatprep.subr.mxu0 0.0
    %118 = vmatpush1.msra.mxu0 0.0
    %119 = vmatprep.subr.mxu0 0.0
    %120 = vmatpush1.msra.mxu0 0.0
    %121 = vmatprep.subr.mxu0 0.0
    %122 = vmatpush1.msra.mxu0 0.0
    %123 = vmatprep.subr.mxu0 0.0
    %124 = vmatpush1.msra.mxu0 0.0
    %125 = vmatprep.subr.mxu0 0.0
    %126 = vmatpush1.msra.mxu0 0.0
    %127 = vmatprep.subr.mxu0 0.0
    %128 = vmatpush1.msra.mxu0 0.0
    %129 = vmatprep.subr.mxu0 0.0
    %130 = vmatpush1.msra.mxu0 0.0
    %131 = vmatprep.subr.mxu0 0.0
    %132 = vmatpush1.msra.mxu0 0.0
    %133 = vmatprep.subr.mxu0 0.0
    %134 = vmatpush1.msra.mxu0 0.0
    %135 = vmatprep.subr.mxu0 0.0
    %136 = vmatpush1.msra.mxu0 0.0
    %137 = vmatprep.subr.mxu0 0.0
    %138 = vmatpush1.msra.mxu0 0.0
    %139 = vmatprep.subr.mxu0 0.0
    %140 = vmatpush1.msra.mxu0 0.0
    %141 = vmatprep.subr.mxu0 0.0
    %142 = vmatpush1.msra.mxu0 0.0
    %143 = vmatprep.mubr.f32.mxu0 0.0
    %144 = vmatmul.mubr.f32.gmra.mrb[0].mxu0 %v74
    %v145 = vpop.f32.mrb[0].mxu0
    %v146 = vadd.f32 0.0, %v145
    %v147 = vpop.f32.mrb[0].mxu0
    %v148 = vadd.f32 0.0, %v147
    %149 = vmatprep.mubr.f32.mxu0 0.0
    %150 = vmatmul.mubr.f32.gmra.mrb[0].mxu0 %v77
    %v151 = vpop.f32.mrb[0].mxu0
    %v152 = vadd.f32 0.0, %v151
    %v153 = vpop.f32.mrb[0].mxu0
    %v154 = vadd.f32 0.0, %v153
    %155 = vdwg.mxu0
    %v156 = vxor.u32 %v146, 2147483648
    %v157 = vxor.u32 %v152, 2147483648
    %v158 = vmul.f32 %v156, 1.442695
    %v159 = vpow.pop %v158
    %v160 = vmul.f32 %v157, 1.442695
    %v161 = vpow.pop %v160
    %v162 = vadd.f32 %v159, 1.0
    %v163 = vadd.f32 %v161, 1.0
    %v164 = vrcp.pop %v162
    %v165 = vmul.f32 1.0, %v164
    %v166 = vrcp.pop %v163
    %v167 = vmul.f32 1.0, %v166
    %v168 = vmul.f32 %v146, %v165
    %v169 = vmul.f32 %v152, %v167
    %v170 = vmul.f32 %v168, %v148
    %v171 = vmul.f32 %v169, %v154
    %v172 = vld [vmem:[#allocation2] sm:$0xff]
    %v173 = vld [vmem:[#allocation2 + $0x8] sm:$0xff]
    %v174 = vld [vmem:[%s53] sm:$0xff]
    %v175 = vld [vmem:[%s53 + $0x8] sm:$0xff]
    %v176 = vld [vmem:[%s53 + $0x10] sm:$0xff]
    %v177 = vld [vmem:[%s53 + $0x18] sm:$0xff]
    %v178 = vld [vmem:[%s53 + $0x20] sm:$0xff]
    %v179 = vld [vmem:[%s53 + $0x28] sm:$0xff]
    %v180 = vld [vmem:[%s53 + $0x30] sm:$0xff]
    %v181 = vld [vmem:[%s53 + $0x38] sm:$0xff]
    %v182 = vld [vmem:[%s53 + $0x40] sm:$0xff]
    %v183 = vld [vmem:[%s53 + $0x48] sm:$0xff]
    %v184 = vld [vmem:[%s53 + $0x50] sm:$0xff]
    %v185 = vld [vmem:[%s53 + $0x58] sm:$0xff]
    %v186 = vld [vmem:[%s53 + $0x60] sm:$0xff]
    %v187 = vld [vmem:[%s53 + $0x68] sm:$0xff]
    %v188 = vld [vmem:[%s53 + $0x70] sm:$0xff]
    %v189 = vld [vmem:[%s53 + $0x78] sm:$0xff]
    %190 = vmatprep.subr.mxu0 0.0
    %191 = vmatpush1.msra.mxu0 %v174
    %192 = vmatprep.subr.mxu0 0.0
    %193 = vmatpush1.msra.mxu0 %v175
    %194 = vmatprep.subr.mxu0 0.0
    %195 = vmatpush1.msra.mxu0 %v176
    %196 = vmatprep.subr.mxu0 0.0
    %197 = vmatpush1.msra.mxu0 %v177
    %198 = vmatprep.subr.mxu0 0.0
    %199 = vmatpush1.msra.mxu0 %v178
    %200 = vmatprep.subr.mxu0 0.0
    %201 = vmatpush1.msra.mxu0 %v179
    %202 = vmatprep.subr.mxu0 0.0
    %203 = vmatpush1.msra.mxu0 %v180
    %204 = vmatprep.subr.mxu0 0.0
    %205 = vmatpush1.msra.mxu0 %v181
    %206 = vmatprep.subr.mxu0 0.0
    %207 = vmatpush1.msra.mxu0 %v182
    %208 = vmatprep.subr.mxu0 0.0
    %209 = vmatpush1.msra.mxu0 %v183
    %210 = vmatprep.subr.mxu0 0.0
    %211 = vmatpush1.msra.mxu0 %v184
    %212 = vmatprep.subr.mxu0 0.0
    %213 = vmatpush1.msra.mxu0 %v185
    %214 = vmatprep.subr.mxu0 0.0
    %215 = vmatpush1.msra.mxu0 %v186
    %216 = vmatprep.subr.mxu0 0.0
    %217 = vmatpush1.msra.mxu0 %v187
    %218 = vmatprep.subr.mxu0 0.0
    %219 = vmatpush1.msra.mxu0 %v188
    %220 = vmatprep.subr.mxu0 0.0
    %221 = vmatpush1.msra.mxu0 %v189
    %222 = vmatprep.subr.mxu0 0.0
    %223 = vmatpush1.msra.mxu0 0.0
    %224 = vmatprep.subr.mxu0 0.0
    %225 = vmatpush1.msra.mxu0 0.0
    %226 = vmatprep.subr.mxu0 0.0
    %227 = vmatpush1.msra.mxu0 0.0
    %228 = vmatprep.subr.mxu0 0.0
    %229 = vmatpush1.msra.mxu0 0.0
    %230 = vmatprep.subr.mxu0 0.0
    %231 = vmatpush1.msra.mxu0 0.0
    %232 = vmatprep.subr.mxu0 0.0
    %233 = vmatpush1.msra.mxu0 0.0
    %234 = vmatprep.subr.mxu0 0.0
    %235 = vmatpush1.msra.mxu0 0.0
    %236 = vmatprep.subr.mxu0 0.0
    %237 = vmatpush1.msra.mxu0 0.0
    %238 = vmatprep.subr.mxu0 0.0
    %239 = vmatpush1.msra.mxu0 0.0
    %240 = vmatprep.subr.mxu0 0.0
    %241 = vmatpush1.msra.mxu0 0.0
    %242 = vmatprep.subr.mxu0 0.0
    %243 = vmatpush1.msra.mxu0 0.0
    %244 = vmatprep.subr.mxu0 0.0
    %245 = vmatpush1.msra.mxu0 0.0
    %246 = vmatprep.subr.mxu0 0.0
    %247 = vmatpush1.msra.mxu0 0.0
    %248 = vmatprep.subr.mxu0 0.0
    %249 = vmatpush1.msra.mxu0 0.0
    %250 = vmatprep.subr.mxu0 0.0
    %251 = vmatpush1.msra.mxu0 0.0
    %252 = vmatprep.subr.mxu0 0.0
    %253 = vmatpush1.msra.mxu0 0.0
    %254 = vmatprep.mubr.f32.mxu0 0.0
    %255 = vmatmul.mubr.f32.gmra.mrb[0].mxu0 %v170
    %v256 = vpop.f32.mrb[0].mxu0
    %v257 = vadd.f32 0.0, %v256
    %v258 = vpop.f32.mrb[0].mxu0
    %259 = vmatprep.mubr.f32.mxu0 0.0
    %260 = vmatmul.mubr.f32.gmra.mrb[0].mxu0 %v171
    %v261 = vpop.f32.mrb[0].mxu0
    %v262 = vadd.f32 0.0, %v261
    %v263 = vpop.f32.mrb[0].mxu0
    %264 = vdwg.mxu0
    %v265 = vadd.f32 %v172, %v257
    %v266 = vadd.f32 %v173, %v262
    %267 = vst.msk [vmem:[#allocation2] sm:$0xff] %vm72, %v265
    %268 = vst.msk [vmem:[#allocation2 + $0x8] sm:$0xff] %vm72, %v266
    // Predicated region
    $region18: #{tpu_custom_call.1} parent=1 // pred_check
      %p269 = pneg %p55
    $region19: #{tpu_custom_call.1} parent=1 // pred_check_branch
      %271 = sbr.rel (%p269) target = $region21
    $region20: #{tpu_custom_call.1} parent=1 // pred_region
      %v272 = vld [vmem:[#allocation2] sm:$0xff]
      %v273 = vld [vmem:[#allocation2 + $0x8] sm:$0xff]
      %274 = vst.msk [vmem:[#allocation3] sm:$0xff] %vm72, %v272
      %275 = vst.msk [vmem:[#allocation3 + $0x8] sm:$0xff] %vm72, %v273
    $region21: #{tpu_custom_call.1} parent=1 // pred_fallthru
      _
    // Predicated region
    $region22: #{tpu_custom_call.1} parent=1 // pred_check
      _
    $region23: #{tpu_custom_call.1} parent=1 // pred_check_branch
      %277 = sbr.rel (0) target = $region25
    $region24: #{tpu_custom_call.1} parent=1 // pred_region
      %s279 = ssub.s32 256, 256
      %280 = vsyncadd [#allocation4], %s279
      %s281 = sshll.u32 [#allocation3], 4
      %s282 = int_to_ptr.vmem [resolvable:$true] %s281
      %287 = dma.vmem_to_hbm [thread:$0]  %s282, 256, %s3, [#allocation4], 128, 128, 8
    $region25: #{tpu_custom_call.1} parent=1 // pred_fallthru
      _
    // Predicated region
    $region26: #{tpu_custom_call.1} parent=1 // pred_check
      _
    $region27: #{tpu_custom_call.1} parent=1 // pred_check_branch
      %289 = sbr.rel (0) target = $region29
    $region28: #{tpu_custom_call.1} parent=1 // pred_region
      %290 = dma.done [#allocation4], 256
    $region29: #{tpu_custom_call.1} parent=1 // pred_fallthru
      _
    %291 = vsyncpa [#allocation4], 1

</llo_original>
